<compile_context>
chip_gen: v7x
topology: tpu7x:2x2x1
jax: 0.10.0
libtpu: 0.0.40
codegen_flags: <defaults>
</compile_context>

<pallas_src>
import functools

import jax
import jax.numpy as jnp
from jax.experimental import pallas as pl
from jax.experimental.pallas import tpu as pltpu

_SUBLANES = 8
_LANES = 128


def _round_up(x, m):
    return (x + m - 1) // m * m


# --------------------------------------------------------------------------- #
# Kernel: one grid step = one timestep of one batch tile.
# --------------------------------------------------------------------------- #
def _gru_seq_kernel(x_ref, h0_ref, wih_ref, whh_ref, brz_ref, bin_ref, bhn_ref,
                    wro_ref, bro_ref, y_ref, hs_ref, h_scr):
    t = pl.program_id(1)          # recurrent ("arbitrary") axis
    Hp = h0_ref.shape[1]

    # Load the initial hidden state into the f32 VMEM accumulator at t == 0.
    @pl.when(t == 0)
    def _init():
        h_scr[...] = h0_ref[...].astype(jnp.float32)

    h = h_scr[...]                                   # carried in f32 (no drift)
    wdt = wih_ref.dtype                              # f32 or bf16 (MXU operand dtype)

    # Gate pre-activations: (B_TILE, 3*Hp).  Biases are folded in afterwards.
    gi = jnp.dot(x_ref[...].astype(wdt), wih_ref[...],
                 preferred_element_type=jnp.float32)
    gh = jnp.dot(h.astype(wdt), whh_ref[...],
                 preferred_element_type=jnp.float32)

    # Lane-aligned gate slices (gate blocks live at 0, Hp, 2*Hp).
    rz = jax.nn.sigmoid(gi[:, :2 * Hp] + gh[:, :2 * Hp] + brz_ref[...])
    r = rz[:, :Hp]
    z = rz[:, Hp:]
    n = jnp.tanh(gi[:, 2 * Hp:] + bin_ref[...] + r * (gh[:, 2 * Hp:] + bhn_ref[...]))
    h_new = (1.0 - z) * n + z * h                     # all gate math in f32

    # Read-out layer (nn.Linear(hidden, output)).
    y = jnp.dot(h_new.astype(wdt), wro_ref[...],
                preferred_element_type=jnp.float32) + bro_ref[...]

    h_scr[...] = h_new
    hs_ref[...] = h_new.astype(hs_ref.dtype)
    y_ref[...] = y.astype(y_ref.dtype)


# --------------------------------------------------------------------------- #
# One-time parameter preparation (pad / transpose / fold biases / cast).
# --------------------------------------------------------------------------- #
def prepare_params(params, weight_dtype=jnp.float32):
    """params: torch-layout dict w_ih (3H,I), w_hh (3H,H), b_ih (3H,), b_hh (3H,),
    w_ro (O,H), b_ro (O,).  Gate order (r, z, n) is preserved.
    Use weight_dtype=jnp.bfloat16 on v6e/v7x for the fast MXU path."""
    w_ih = jnp.asarray(params["w_ih"], jnp.float32)
    w_hh = jnp.asarray(params["w_hh"], jnp.float32)
    b_ih = jnp.asarray(params["b_ih"], jnp.float32)
    b_hh = jnp.asarray(params["b_hh"], jnp.float32)
    w_ro = jnp.asarray(params["w_ro"], jnp.float32)
    b_ro = jnp.asarray(params["b_ro"], jnp.float32)

    H = w_hh.shape[1]
    I = w_ih.shape[1]
    O = w_ro.shape[0]
    Hp = _round_up(H, _LANES)
    Ip = _round_up(I, _LANES)
    Op = _round_up(O, _LANES)

    def pad_gate_weight(w_t, rows, rows_p):
        # w_t: (rows, 3H) -> (rows_p, 3*Hp) with each gate at a lane-aligned offset.
        out = jnp.zeros((rows_p, 3 * Hp), jnp.float32)
        for g in range(3):
            out = out.at[:rows, g * Hp:g * Hp + H].set(w_t[:, g * H:(g + 1) * H])
        return out

    wih_t = pad_gate_weight(w_ih.T, I, Ip).astype(weight_dtype)   # (Ip, 3Hp)
    whh_t = pad_gate_weight(w_hh.T, H, Hp).astype(weight_dtype)   # (Hp, 3Hp)

    # Fold r/z biases (b_ih + b_hh); keep the n biases separate (b_hn sits
    # inside r * (h @ W_hn^T + b_hn) in the torch GRUCell formulation).
    brz = jnp.zeros((1, 2 * Hp), jnp.float32)
    brz = brz.at[0, :H].set(b_ih[:H] + b_hh[:H])
    brz = brz.at[0, Hp:Hp + H].set(b_ih[H:2 * H] + b_hh[H:2 * H])
    b_in = jnp.zeros((1, Hp), jnp.float32).at[0, :H].set(b_ih[2 * H:])
    b_hn = jnp.zeros((1, Hp), jnp.float32).at[0, :H].set(b_hh[2 * H:])

    wro_t = jnp.zeros((Hp, Op), jnp.float32).at[:H, :O].set(w_ro.T).astype(weight_dtype)
    bro = jnp.zeros((1, Op), jnp.float32).at[0, :O].set(b_ro)

    return {
        "wih_t": wih_t, "whh_t": whh_t, "brz": brz, "b_in": b_in, "b_hn": b_hn,
        "wro_t": wro_t, "bro": bro,
        "dims": (I, H, O, Ip, Hp, Op),
    }


# --------------------------------------------------------------------------- #
# Fused-sequence forward: one pallas_call for the whole time loop.
# --------------------------------------------------------------------------- #
def my_gru_sequence_forward(x_seq, h0, prep):
    """x_seq: (T, B, I), h0: (B, H).  Applies MyGRUCell.forward at every step.
    Returns (y_seq (T,B,O), h_seq (T,B,H), ones_like(h_seq))."""
    I, H, O, Ip, Hp, Op = prep["dims"]
    T, B, I_in = x_seq.shape
    assert I_in == I and h0.shape == (B, H)

    # Batch padding / tiling: multiple of 8 sublanes; tiles of 128 if large so a
    # "parallel" batch axis exists for the v7x megacore.
    Bp = _round_up(B, _SUBLANES)
    if Bp > _LANES:
        Bp = _round_up(Bp, _LANES)
        b_tile = _LANES
    else:
        b_tile = Bp
    nb = Bp // b_tile

    xp = jnp.pad(x_seq.astype(jnp.float32), ((0, 0), (0, Bp - B), (0, Ip - I)))
    hp = jnp.pad(h0.astype(jnp.float32), ((0, Bp - B), (0, Hp - H)))

    # Explicit VMEM budget (v7x: only 64 MiB/TC) — resident weights (x2 for
    # conservatism) + double-buffered per-step x/y/h slabs + scratch + slack.
    weight_bytes = sum(int(prep[k].size) * prep[k].dtype.itemsize
                       for k in ("wih_t", "whh_t", "brz", "b_in", "b_hn",
                                 "wro_t", "bro"))
    io_bytes = 2 * b_tile * (Ip + Op + Hp) * 4
    scratch_bytes = b_tile * Hp * 4
    vmem_limit = int(min(2 * (weight_bytes + io_bytes) + scratch_bytes + (4 << 20),
                         96 << 20))

    const2 = lambda b, t: (0, 0)   # resident weights/biases: never re-DMA'd

    y_pad, h_pad = pl.pallas_call(
        _gru_seq_kernel,
        out_shape=(
            jax.ShapeDtypeStruct((T, Bp, Op), jnp.float32),
            jax.ShapeDtypeStruct((T, Bp, Hp), jnp.float32),
        ),
        grid=(nb, T),
        in_specs=[
            pl.BlockSpec((None, b_tile, Ip), lambda b, t: (t, b, 0)),   # x_t slab
            pl.BlockSpec((b_tile, Hp), lambda b, t: (b, 0)),            # h0
            pl.BlockSpec((Ip, 3 * Hp), const2),                         # W_ih^T
            pl.BlockSpec((Hp, 3 * Hp), const2),                         # W_hh^T
            pl.BlockSpec((1, 2 * Hp), const2),                          # b_r+b_z
            pl.BlockSpec((1, Hp), const2),                              # b_in
            pl.BlockSpec((1, Hp), const2),                              # b_hn
            pl.BlockSpec((Hp, Op), const2),                             # W_ro^T
            pl.BlockSpec((1, Op), const2),                              # b_ro
        ],
        out_specs=(
            pl.BlockSpec((None, b_tile, Op), lambda b, t: (t, b, 0)),
            pl.BlockSpec((None, b_tile, Hp), lambda b, t: (t, b, 0)),
        ),
        scratch_shapes=[pltpu.VMEM((b_tile, Hp), jnp.float32)],          # carried h (f32)
        compiler_params=pltpu.CompilerParams(
            dimension_semantics=("parallel", "arbitrary"),
            vmem_limit_bytes=vmem_limit),
    )(xp, hp, prep["wih_t"], prep["whh_t"], prep["brz"], prep["b_in"],
      prep["b_hn"], prep["wro_t"], prep["bro"])

    y_seq = y_pad[:, :B, :O]
    h_seq = h_pad[:, :B, :H]
    # Third return value of the module is a constant ones tensor (pure glue).
    return y_seq, h_seq, jnp.ones_like(h_seq)


def my_gru_cell_forward(x_t, h_tminus1, prep):
    """Single-step forward matching MyGRUCell.forward(x_t, h_{t-1})."""
    y_seq, h_seq, _ = my_gru_sequence_forward(x_t[None], h_tminus1, prep)
    h_t = h_seq[0]
    return y_seq[0], h_t, jnp.ones_like(h_t)


# --------------------------------------------------------------------------- #
# Init + self-test
# --------------------------------------------------------------------------- #
def init_params(key, input_size, hidden_size, output_size):
    """Deterministic init, matching torch.nn.GRUCell / nn.Linear shapes."""
    k = 1.0 / jnp.sqrt(hidden_size)
    keys = jax.random.split(key, 6)
    u = lambda kk, shape, bound: jax.random.uniform(
        kk, shape, jnp.float32, minval=-bound, maxval=bound)
    return {
        "w_ih": u(keys[0], (3 * hidden_size, input_size), k),
        "w_hh": u(keys[1], (3 * hidden_size, hidden_size), k),
        "b_ih": u(keys[2], (3 * hidden_size,), k),
        "b_hh": u(keys[3], (3 * hidden_size,), k),
        "w_ro": u(keys[4], (output_size, hidden_size), k),
        "b_ro": u(keys[5], (output_size,), k),
    }


def _ref_step(params, x, h):
    """Pure-JAX torch.nn.GRUCell + nn.Linear reference."""
    H = params["w_hh"].shape[1]
    gi = x @ params["w_ih"].T + params["b_ih"]
    gh = h @ params["w_hh"].T + params["b_hh"]
    r = jax.nn.sigmoid(gi[:, :H] + gh[:, :H])
    z = jax.nn.sigmoid(gi[:, H:2 * H] + gh[:, H:2 * H])
    n = jnp.tanh(gi[:, 2 * H:] + r * gh[:, 2 * H:])
    h_new = (1.0 - z) * n + z * h
    y = h_new @ params["w_ro"].T + params["b_ro"]
    return h_new, y


if __name__ == "__main__":
    B, INPUT, HIDDEN, OUTPUT, T = 2, 16, 32, 16, 8   # output != hidden -> Linear readout

    key = jax.random.PRNGKey(0)
    k_x, k_h, k_p = jax.random.split(key, 3)

    params = init_params(k_p, INPUT, HIDDEN, OUTPUT)
    prep_f32 = prepare_params(params)                              # v5e-safe default
    prep_bf16 = prepare_params(params, weight_dtype=jnp.bfloat16)  # v6e/v7x MXU path

    x_seq = jax.random.normal(k_x, (T, B, INPUT), jnp.float32)
    h0 = jax.random.normal(k_h, (B, HIDDEN), jnp.float32)

    # --- single-step call (exact module semantics) ---
    y1, h1, ones1 = my_gru_cell_forward(x_seq[0], h0, prep_f32)
    jax.block_until_ready((y1, h1, ones1))
    h_ref1, y_ref1 = _ref_step(params, x_seq[0], h0)
    assert y1.shape == (B, OUTPUT) and h1.shape == (B, HIDDEN)
    assert jnp.allclose(h1, h_ref1, atol=1e-5, rtol=1e-5)
    assert jnp.allclose(y1, y_ref1, atol=1e-5, rtol=1e-5)
    assert ones1.shape == h1.shape and bool(jnp.all(ones1 == 1.0))

    # --- fused-sequence call (time loop inside one kernel) ---
    y_seq, h_seq, ones_seq = my_gru_sequence_forward(x_seq, h0, prep_f32)
    jax.block_until_ready((y_seq, h_seq, ones_seq))
    h = h0
    h_ref_list, y_ref_list = [], []
    for t in range(T):
        h, y = _ref_step(params, x_seq[t], h)
        h_ref_list.append(h)
        y_ref_list.append(y)
    h_ref_seq = jnp.stack(h_ref_list)
    y_ref_seq = jnp.stack(y_ref_list)
    assert jnp.allclose(h_seq, h_ref_seq, atol=1e-4, rtol=1e-4)
    assert jnp.allclose(y_seq, y_ref_seq, atol=1e-4, rtol=1e-4)
    assert ones_seq.shape == h_seq.shape and bool(jnp.all(ones_seq == 1.0))

    # --- bf16-weight variant (v6e/v7x): gate math & carried h stay f32 ---
    y_bf, h_bf, _ = my_gru_sequence_forward(x_seq, h0, prep_bf16)
    jax.block_until_ready((y_bf, h_bf))
    assert float(jnp.max(jnp.abs(h_bf - h_ref_seq))) < 0.1
    assert float(jnp.max(jnp.abs(y_bf - y_ref_seq))) < 0.1

    print("KERNEL_OK")
</pallas_src>

<mosaic_0001>
module attributes {stable_mosaic.version = 11 : i64} {
  func.func @_gru_seq_kernel(%arg0: i32, %arg1: i32, %arg2: memref<1x8x128xf32, #tpu.memory_space<vmem>>, %arg3: memref<8x128xf32, #tpu.memory_space<vmem>>, %arg4: memref<128x384xf32, #tpu.memory_space<vmem>>, %arg5: memref<128x384xf32, #tpu.memory_space<vmem>>, %arg6: memref<1x256xf32, #tpu.memory_space<vmem>>, %arg7: memref<1x128xf32, #tpu.memory_space<vmem>>, %arg8: memref<1x128xf32, #tpu.memory_space<vmem>>, %arg9: memref<128x128xf32, #tpu.memory_space<vmem>>, %arg10: memref<1x128xf32, #tpu.memory_space<vmem>>, %arg11: memref<1x8x128xf32, #tpu.memory_space<vmem>>, %arg12: memref<1x8x128xf32, #tpu.memory_space<vmem>>, %arg13: memref<8x128xf32, #tpu.memory_space<vmem>>) attributes {dimension_semantics = [#tpu.dimension_semantics<parallel>, #tpu.dimension_semantics<arbitrary>], iteration_bounds = array<i64: 1, 1>, scalar_prefetch = 0 : i64, scratch_operands = 1 : i64, tpu.core_type = #tpu.core_type<tc>, window_params = [{transform_indices = @transform_0, window_bounds = array<i64: 1, 8, 128>}, {transform_indices = @transform_1, window_bounds = array<i64: 8, 128>}, {pipeline_mode = #tpu.pipeline_mode<synchronous>, transform_indices = @transform_2, window_bounds = array<i64: 128, 384>}, {pipeline_mode = #tpu.pipeline_mode<synchronous>, transform_indices = @transform_3, window_bounds = array<i64: 128, 384>}, {pipeline_mode = #tpu.pipeline_mode<synchronous>, transform_indices = @transform_4, window_bounds = array<i64: 1, 256>}, {pipeline_mode = #tpu.pipeline_mode<synchronous>, transform_indices = @transform_5, window_bounds = array<i64: 1, 128>}, {pipeline_mode = #tpu.pipeline_mode<synchronous>, transform_indices = @transform_6, window_bounds = array<i64: 1, 128>}, {pipeline_mode = #tpu.pipeline_mode<synchronous>, transform_indices = @transform_7, window_bounds = array<i64: 128, 128>}, {pipeline_mode = #tpu.pipeline_mode<synchronous>, transform_indices = @transform_8, window_bounds = array<i64: 1, 128>}, {transform_indices = @transform_9, window_bounds = array<i64: 1, 8, 128>}, {transform_indices = @transform_10, window_bounds = array<i64: 1, 8, 128>}]} {
    %c0_i32 = arith.constant 0 : i32
    %0 = arith.cmpi eq, %arg1, %c0_i32 : i32
    %1 = arith.extui %0 : i1 to i32
    %c0_i32_0 = arith.constant 0 : i32
    %2 = arith.cmpi ne, %1, %c0_i32_0 : i32
    scf.if %2 {
      %c0_31 = arith.constant 0 : index
      %c0_32 = arith.constant 0 : index
      %51 = vector.load %arg3[%c0_31, %c0_32] : memref<8x128xf32, #tpu.memory_space<vmem>>, vector<8x128xf32>
      %c0_33 = arith.constant 0 : index
      %c0_34 = arith.constant 0 : index
      %52 = vector.load %arg13[%c0_33, %c0_34] : memref<8x128xf32, #tpu.memory_space<vmem>>, vector<8x128xf32>
      tpu.vector_store %arg13[%c0_33, %c0_34], %51 {strides = array<i32>} : memref<8x128xf32, #tpu.memory_space<vmem>>, vector<8x128xf32>,
    } else {
    }
    %c0 = arith.constant 0 : index
    %c0_1 = arith.constant 0 : index
    %3 = vector.load %arg13[%c0, %c0_1] : memref<8x128xf32, #tpu.memory_space<vmem>>, vector<8x128xf32>
    %c0_2 = arith.constant 0 : index
    %c0_3 = arith.constant 0 : index
    %c0_4 = arith.constant 0 : index
    %4 = vector.load %arg2[%c0_2, %c0_3, %c0_4] : memref<1x8x128xf32, #tpu.memory_space<vmem>>, vector<1x8x128xf32>
    %5 = vector.shape_cast %4 : vector<1x8x128xf32> to vector<8x128xf32>
    %c0_5 = arith.constant 0 : index
    %c0_6 = arith.constant 0 : index
    %6 = vector.load %arg4[%c0_5, %c0_6] : memref<128x384xf32, #tpu.memory_space<vmem>>, vector<128x384xf32>
    %cst = arith.constant dense<0.000000e+00> : vector<8x384xf32>
    %7 = tpu.matmul %5, %6, %cst {dimension_numbers = #tpu.dot_dimension_numbers<[1], [0], [0], [1], [0, 0, 1, 1], [], []>} : vector<8x128xf32>, vector<128x384xf32>, vector<8x384xf32> -> vector<8x384xf32>
    %c0_7 = arith.constant 0 : index
    %c0_8 = arith.constant 0 : index
    %8 = vector.load %arg5[%c0_7, %c0_8] : memref<128x384xf32, #tpu.memory_space<vmem>>, vector<128x384xf32>
    %cst_9 = arith.constant dense<0.000000e+00> : vector<8x384xf32>
    %9 = tpu.matmul %3, %8, %cst_9 {dimension_numbers = #tpu.dot_dimension_numbers<[1], [0], [0], [1], [0, 0, 1, 1], [], []>} : vector<8x128xf32>, vector<128x384xf32>, vector<8x384xf32> -> vector<8x384xf32>
    %10 = vector.extract_strided_slice %7 {offsets = [0, 0], sizes = [8, 256], strides = [1, 1]} : vector<8x384xf32> to vector<8x256xf32>
    %11 = vector.extract_strided_slice %9 {offsets = [0, 0], sizes = [8, 256], strides = [1, 1]} : vector<8x384xf32> to vector<8x256xf32>
    %12 = arith.addf %10, %11 : vector<8x256xf32>
    %c0_10 = arith.constant 0 : index
    %c0_11 = arith.constant 0 : index
    %13 = vector.load %arg6[%c0_10, %c0_11] : memref<1x256xf32, #tpu.memory_space<vmem>>, vector<1x256xf32>
    %14 = vector.broadcast %13 : vector<1x256xf32> to vector<8x256xf32>
    %15 = arith.addf %12, %14 : vector<8x256xf32>
    %16 = arith.negf %15 : vector<8x256xf32>
    %17 = math.exp %16 : vector<8x256xf32>
    %cst_12 = arith.constant 1.000000e+00 : f32
    %18 = vector.broadcast %cst_12 : f32 to vector<8x256xf32>
    %19 = arith.addf %18, %17 : vector<8x256xf32>
    %20 = arith.divf %18, %19 : vector<8x256xf32>
    %21 = vector.extract_strided_slice %20 {offsets = [0, 0], sizes = [8, 128], strides = [1, 1]} : vector<8x256xf32> to vector<8x128xf32>
    %22 = vector.extract_strided_slice %20 {offsets = [0, 128], sizes = [8, 128], strides = [1, 1]} : vector<8x256xf32> to vector<8x128xf32>
    %23 = vector.extract_strided_slice %7 {offsets = [0, 256], sizes = [8, 128], strides = [1, 1]} : vector<8x384xf32> to vector<8x128xf32>
    %c0_13 = arith.constant 0 : index
    %c0_14 = arith.constant 0 : index
    %24 = vector.load %arg7[%c0_13, %c0_14] : memref<1x128xf32, #tpu.memory_space<vmem>>, vector<1x128xf32>
    %25 = vector.broadcast %24 : vector<1x128xf32> to vector<8x128xf32>
    %26 = arith.addf %23, %25 : vector<8x128xf32>
    %27 = vector.extract_strided_slice %9 {offsets = [0, 256], sizes = [8, 128], strides = [1, 1]} : vector<8x384xf32> to vector<8x128xf32>
    %c0_15 = arith.constant 0 : index
    %c0_16 = arith.constant 0 : index
    %28 = vector.load %arg8[%c0_15, %c0_16] : memref<1x128xf32, #tpu.memory_space<vmem>>, vector<1x128xf32>
    %29 = vector.broadcast %28 : vector<1x128xf32> to vector<8x128xf32>
    %30 = arith.addf %27, %29 : vector<8x128xf32>
    %31 = arith.mulf %21, %30 : vector<8x128xf32>
    %32 = arith.addf %26, %31 : vector<8x128xf32>
    %33 = math.tanh %32 : vector<8x128xf32>
    %cst_17 = arith.constant 1.000000e+00 : f32
    %34 = vector.broadcast %cst_17 : f32 to vector<8x128xf32>
    %35 = arith.subf %34, %22 : vector<8x128xf32>
    %36 = arith.mulf %35, %33 : vector<8x128xf32>
    %37 = arith.mulf %22, %3 : vector<8x128xf32>
    %38 = arith.addf %36, %37 : vector<8x128xf32>
    %c0_18 = arith.constant 0 : index
    %c0_19 = arith.constant 0 : index
    %39 = vector.load %arg9[%c0_18, %c0_19] : memref<128x128xf32, #tpu.memory_space<vmem>>, vector<128x128xf32>
    %cst_20 = arith.constant dense<0.000000e+00> : vector<8x128xf32>
    %40 = tpu.matmul %38, %39, %cst_20 {dimension_numbers = #tpu.dot_dimension_numbers<[1], [0], [0], [1], [0, 0, 1, 1], [], []>} : vector<8x128xf32>, vector<128x128xf32>, vector<8x128xf32> -> vector<8x128xf32>
    %c0_21 = arith.constant 0 : index
    %c0_22 = arith.constant 0 : index
    %41 = vector.load %arg10[%c0_21, %c0_22] : memref<1x128xf32, #tpu.memory_space<vmem>>, vector<1x128xf32>
    %42 = vector.broadcast %41 : vector<1x128xf32> to vector<8x128xf32>
    %43 = arith.addf %40, %42 : vector<8x128xf32>
    %c0_23 = arith.constant 0 : index
    %c0_24 = arith.constant 0 : index
    %44 = vector.load %arg13[%c0_23, %c0_24] : memref<8x128xf32, #tpu.memory_space<vmem>>, vector<8x128xf32>
    tpu.vector_store %arg13[%c0_23, %c0_24], %38 {strides = array<i32>} : memref<8x128xf32, #tpu.memory_space<vmem>>, vector<8x128xf32>,
    %c0_25 = arith.constant 0 : index
    %c0_26 = arith.constant 0 : index
    %c0_27 = arith.constant 0 : index
    %45 = vector.load %arg12[%c0_25, %c0_26, %c0_27] : memref<1x8x128xf32, #tpu.memory_space<vmem>>, vector<1x8x128xf32>
    %46 = vector.shape_cast %45 : vector<1x8x128xf32> to vector<8x128xf32>
    %47 = vector.shape_cast %38 : vector<8x128xf32> to vector<1x8x128xf32>
    tpu.vector_store %arg12[%c0_25, %c0_26, %c0_27], %47 {strides = array<i32>} : memref<1x8x128xf32, #tpu.memory_space<vmem>>, vector<1x8x128xf32>,
    %c0_28 = arith.constant 0 : index
    %c0_29 = arith.constant 0 : index
    %c0_30 = arith.constant 0 : index
    %48 = vector.load %arg11[%c0_28, %c0_29, %c0_30] : memref<1x8x128xf32, #tpu.memory_space<vmem>>, vector<1x8x128xf32>
    %49 = vector.shape_cast %48 : vector<1x8x128xf32> to vector<8x128xf32>
    %50 = vector.shape_cast %43 : vector<8x128xf32> to vector<1x8x128xf32>
    tpu.vector_store %arg11[%c0_28, %c0_29, %c0_30], %50 {strides = array<i32>} : memref<1x8x128xf32, #tpu.memory_space<vmem>>, vector<1x8x128xf32>,
    return
  }
  func.func @transform_0(%arg0: i32, %arg1: i32) -> (i32, i32, i32) {
    %c0_i32 = arith.constant 0 : i32
    %c0_i32_0 = arith.constant 0 : i32
    return %arg1, %arg0, %c0_i32 : i32, i32, i32
  }
  func.func @transform_1(%arg0: i32, %arg1: i32) -> (i32, i32) {
    %c0_i32 = arith.constant 0 : i32
    %c0_i32_0 = arith.constant 0 : i32
    return %arg0, %c0_i32 : i32, i32
  }
  func.func @transform_2(%arg0: i32, %arg1: i32) -> (i32, i32) {
    %c0_i32 = arith.constant 0 : i32
    %c0_i32_0 = arith.constant 0 : i32
    %c0_i32_1 = arith.constant 0 : i32
    return %c0_i32, %c0_i32_0 : i32, i32
  }
  func.func @transform_3(%arg0: i32, %arg1: i32) -> (i32, i32) {
    %c0_i32 = arith.constant 0 : i32
    %c0_i32_0 = arith.constant 0 : i32
    %c0_i32_1 = arith.constant 0 : i32
    return %c0_i32, %c0_i32_0 : i32, i32
  }
  func.func @transform_4(%arg0: i32, %arg1: i32) -> (i32, i32) {
    %c0_i32 = arith.constant 0 : i32
    %c0_i32_0 = arith.constant 0 : i32
    %c0_i32_1 = arith.constant 0 : i32
    return %c0_i32, %c0_i32_0 : i32, i32
  }
  func.func @transform_5(%arg0: i32, %arg1: i32) -> (i32, i32) {
    %c0_i32 = arith.constant 0 : i32
    %c0_i32_0 = arith.constant 0 : i32
    %c0_i32_1 = arith.constant 0 : i32
    return %c0_i32, %c0_i32_0 : i32, i32
  }
  func.func @transform_6(%arg0: i32, %arg1: i32) -> (i32, i32) {
    %c0_i32 = arith.constant 0 : i32
    %c0_i32_0 = arith.constant 0 : i32
    %c0_i32_1 = arith.constant 0 : i32
    return %c0_i32, %c0_i32_0 : i32, i32
  }
  func.func @transform_7(%arg0: i32, %arg1: i32) -> (i32, i32) {
    %c0_i32 = arith.constant 0 : i32
    %c0_i32_0 = arith.constant 0 : i32
    %c0_i32_1 = arith.constant 0 : i32
    return %c0_i32, %c0_i32_0 : i32, i32
  }
  func.func @transform_8(%arg0: i32, %arg1: i32) -> (i32, i32) {
    %c0_i32 = arith.constant 0 : i32
    %c0_i32_0 = arith.constant 0 : i32
    %c0_i32_1 = arith.constant 0 : i32
    return %c0_i32, %c0_i32_0 : i32, i32
  }
  func.func @transform_9(%arg0: i32, %arg1: i32) -> (i32, i32, i32) {
    %c0_i32 = arith.constant 0 : i32
    %c0_i32_0 = arith.constant 0 : i32
    return %arg1, %arg0, %c0_i32 : i32, i32, i32
  }
  func.func @transform_10(%arg0: i32, %arg1: i32) -> (i32, i32, i32) {
    %c0_i32 = arith.constant 0 : i32
    %c0_i32_0 = arith.constant 0 : i32
    return %arg1, %arg0, %c0_i32 : i32, i32, i32
  }
}

</mosaic_0001>

<llo_original>
// kernel: tpu_custom_call.1
$region0: #{tpu_custom_call.1}
  #allocation0 [shape = 'u32[]', space=smem, size = 0x4, offset = 0x4, fixed_abs, tag = 'smem constant byte address 0x4 - core index']
  #allocation1 [shape = 'u32[144,128]{1,0:T(1,128)}', space=vmem, size = 0x12000, scoped, tag = 'internal scratch']
  #allocation2 [shape = 'f32[8,128]{1,0:T(8,128)}', space=vmem, size = 0x1000, scoped, tag = 'scratch operand']
  %s0 = inlined_call_operand.hbm [shape: f32[1,8,128], index: 0, kind: input, shape index: {}]
  %s1 = inlined_call_operand.hbm [shape: f32[8,128], index: 1, kind: input, shape index: {}]
  %s2 = inlined_call_operand.hbm [shape: f32[128,384], index: 2, kind: input, shape index: {}]
  %s3 = inlined_call_operand.hbm [shape: f32[128,384], index: 3, kind: input, shape index: {}]
  %s4 = inlined_call_operand.vmem [shape: f32[1,256], index: 4, kind: input, shape index: {}]
  %s5 = inlined_call_operand.vmem [shape: f32[1,128], index: 5, kind: input, shape index: {}]
  %s6 = inlined_call_operand.vmem [shape: f32[1,128], index: 6, kind: input, shape index: {}]
  %s7 = inlined_call_operand.hbm [shape: f32[128,128], index: 7, kind: input, shape index: {}]
  %s8 = inlined_call_operand.vmem [shape: f32[1,128], index: 8, kind: input, shape index: {}]
  %s9 = inlined_call_operand.hbm [shape: f32[1,8,128], index: 9, kind: output, shape index: {0}]
  %s10 = inlined_call_operand.hbm [shape: f32[1,8,128], index: 10, kind: output, shape index: {1}]
  %11 = xla_tuple %s9, %s10
  %s12 = sld [smem:[#allocation0]]
  $region78: #{tpu_custom_call.1} parent=0
    _
  %s14 = ssub.s32 1, %s12
  %s15 = scalar_select 0, %s14, %s12
  $region1: #{tpu_custom_call.1} parent=0
    #allocation3 [shape = 'u8[4096]{0}', space=vmem, size = 0x1000, scoped, tag = 'input window, operand 0, single buffered']
    #allocation4 [shape = 's32[1]{0}', space=sflag, size = 0x4, scoped, tag = 'scoped memory for tpu_custom_call.1']
    #allocation5 [shape = 's32[1]{0}', space=sflag, size = 0x4, scoped, tag = 'scoped memory for tpu_custom_call.1']
    #allocation6 [shape = 'u8[4096]{0}', space=vmem, size = 0x1000, scoped, tag = 'input window, operand 1, single buffered']
    #allocation7 [shape = 's32[1]{0}', space=sflag, size = 0x4, scoped, tag = 'scoped memory for tpu_custom_call.1']
    #allocation8 [shape = 'u8[196608]{0}', space=vmem, size = 0x30000, scoped, tag = 'input window, operand 2, single buffered']
    #allocation9 [shape = 'u8[196608]{0}', space=vmem, size = 0x30000, scoped, tag = 'input window, operand 3, single buffered']
    #allocation10 [shape = 's32[1]{0}', space=sflag, size = 0x4, scoped, tag = 'scoped memory for tpu_custom_call.1']
    #allocation11 [shape = 'u8[65536]{0}', space=vmem, size = 0x10000, scoped, tag = 'input window, operand 7, single buffered']
    #allocation12 [shape = 'u8[4096]{0}', space=vmem, size = 0x1000, scoped, tag = 'output window, operand 0, single buffered']
    #allocation13 [shape = 'u8[4096]{0}', space=vmem, size = 0x1000, scoped, tag = 'output window, operand 1, single buffered']
    #allocation14 [shape = 's32[1]{0}', space=sflag, size = 0x4, scoped, tag = 'scoped memory for tpu_custom_call.1']
    %16 = vsyncpa [#allocation4], 0
    %17 = vsyncpa [#allocation7], 0
    %18 = vsyncpa [#allocation10], 0
    %19 = vsyncpa [#allocation5], 0
    %20 = vsyncpa [#allocation14], 0
    // Predicated region
    $region2: #{tpu_custom_call.1} parent=1 // pred_check
      _
    $region3: #{tpu_custom_call.1} parent=1 // pred_check_branch
      %22 = sbr.rel (0) target = $region5
    $region4: #{tpu_custom_call.1} parent=1 // pred_region
      %s24 = ssub.s32 128, 128
      %25 = vsyncadd [#allocation4], %s24
      %s27 = sshll.u32 [#allocation3], 4
      %s28 = int_to_ptr.vmem [resolvable:$true] %s27
      %30 = dma.hbm_to_vmem [thread:$0]  %s0, 128, %s28, [#allocation4]
    $region5: #{tpu_custom_call.1} parent=1 // pred_fallthru
      _
    // Predicated region
    $region6: #{tpu_custom_call.1} parent=1 // pred_check
      _
    $region7: #{tpu_custom_call.1} parent=1 // pred_check_branch
      %32 = sbr.rel (0) target = $region9
    $region8: #{tpu_custom_call.1} parent=1 // pred_region
      %s34 = ssub.s32 128, 128
      %35 = vsyncadd [#allocation7], %s34
      %s37 = sshll.u32 [#allocation6], 4
      %s38 = int_to_ptr.vmem [resolvable:$true] %s37
      %40 = dma.hbm_to_vmem [thread:$0]  %s1, 128, %s38, [#allocation7]
    $region9: #{tpu_custom_call.1} parent=1 // pred_fallthru
      _
    // Predicated region
    $region10: #{tpu_custom_call.1} parent=1 // pred_check
      _
    $region11: #{tpu_custom_call.1} parent=1 // pred_check_branch
      %42 = sbr.rel (0) target = $region13
    $region12: #{tpu_custom_call.1} parent=1 // pred_region
      %s44 = ssub.s32 6144, 6144
      %45 = vsyncadd [#allocation7], %s44
      %s46 = sshll.u32 [#allocation8], 4
      %s47 = int_to_ptr.vmem [resolvable:$true] %s46
      %52 = dma.hbm_to_vmem [thread:$0]  %s2, 6144, %s47, [#allocation7], 384, 384, 24
    $region13: #{tpu_custom_call.1} parent=1 // pred_fallthru
      _
    // Predicated region
    $region14: #{tpu_custom_call.1} parent=1 // pred_check
      _
    $region15: #{tpu_custom_call.1} parent=1 // pred_check_branch
      %54 = sbr.rel (0) target = $region17
    $region16: #{tpu_custom_call.1} parent=1 // pred_region
      %s56 = ssub.s32 6144, 6144
      %57 = vsyncadd [#allocation10], %s56
      %s58 = sshll.u32 [#allocation9], 4
      %s59 = int_to_ptr.vmem [resolvable:$true] %s58
      %64 = dma.hbm_to_vmem [thread:$0]  %s3, 6144, %s59, [#allocation10], 384, 384, 24
    $region17: #{tpu_custom_call.1} parent=1 // pred_fallthru
      _
    // Predicated region
    $region18: #{tpu_custom_call.1} parent=1 // pred_check
      _
    $region19: #{tpu_custom_call.1} parent=1 // pred_check_branch
      %66 = sbr.rel (0) target = $region21
    $region20: #{tpu_custom_call.1} parent=1 // pred_region
      _
    $region21: #{tpu_custom_call.1} parent=1 // pred_fallthru
      _
    // Predicated region
    $region22: #{tpu_custom_call.1} parent=1 // pred_check
      _
    $region23: #{tpu_custom_call.1} parent=1 // pred_check_branch
      %68 = sbr.rel (0) target = $region25
    $region24: #{tpu_custom_call.1} parent=1 // pred_region
      _
    $region25: #{tpu_custom_call.1} parent=1 // pred_fallthru
      _
    // Predicated region
    $region26: #{tpu_custom_call.1} parent=1 // pred_check
      _
    $region27: #{tpu_custom_call.1} parent=1 // pred_check_branch
      %70 = sbr.rel (0) target = $region29
    $region28: #{tpu_custom_call.1} parent=1 // pred_region
      _
    $region29: #{tpu_custom_call.1} parent=1 // pred_fallthru
      _
    // Predicated region
    $region30: #{tpu_custom_call.1} parent=1 // pred_check
      _
    $region31: #{tpu_custom_call.1} parent=1 // pred_check_branch
      %72 = sbr.rel (0) target = $region33
    $region32: #{tpu_custom_call.1} parent=1 // pred_region
      %s74 = ssub.s32 2048, 2048
      %75 = vsyncadd [#allocation10], %s74
      %s76 = sshll.u32 [#allocation11], 4
      %s77 = int_to_ptr.vmem [resolvable:$true] %s76
      %82 = dma.hbm_to_vmem [thread:$0]  %s7, 2048, %s77, [#allocation10], 128, 128, 8
    $region33: #{tpu_custom_call.1} parent=1 // pred_fallthru
      _
    // Predicated region
    $region34: #{tpu_custom_call.1} parent=1 // pred_check
      _
    $region35: #{tpu_custom_call.1} parent=1 // pred_check_branch
      %84 = sbr.rel (0) target = $region37
    $region36: #{tpu_custom_call.1} parent=1 // pred_region
      _
    $region37: #{tpu_custom_call.1} parent=1 // pred_fallthru
      _
    // Predicated region
    $region38: #{tpu_custom_call.1} parent=1 // pred_check
      _
    $region39: #{tpu_custom_call.1} parent=1 // pred_check_branch
      %86 = sbr.rel (0) target = $region41
    $region40: #{tpu_custom_call.1} parent=1 // pred_region
      %87 = dma.done [#allocation4], 128
    $region41: #{tpu_custom_call.1} parent=1 // pred_fallthru
      _
    // Predicated region
    $region42: #{tpu_custom_call.1} parent=1 // pred_check
      _
    $region43: #{tpu_custom_call.1} parent=1 // pred_check_branch
      %89 = sbr.rel (0) target = $region45
    $region44: #{tpu_custom_call.1} parent=1 // pred_region
      %90 = dma.done [#allocation7], 128
    $region45: #{tpu_custom_call.1} parent=1 // pred_fallthru
      _
    // Predicated region
    $region46: #{tpu_custom_call.1} parent=1 // pred_check
      _
    $region47: #{tpu_custom_call.1} parent=1 // pred_check_branch
      %92 = sbr.rel (0) target = $region49
    $region48: #{tpu_custom_call.1} parent=1 // pred_region
      %93 = dma.done [#allocation7], 6144
    $region49: #{tpu_custom_call.1} parent=1 // pred_fallthru
      _
    // Predicated region
    $region50: #{tpu_custom_call.1} parent=1 // pred_check
      _
    $region51: #{tpu_custom_call.1} parent=1 // pred_check_branch
      %95 = sbr.rel (0) target = $region53
    $region52: #{tpu_custom_call.1} parent=1 // pred_region
      %96 = dma.done [#allocation10], 6144
    $region53: #{tpu_custom_call.1} parent=1 // pred_fallthru
      _
    // Predicated region
    $region54: #{tpu_custom_call.1} parent=1 // pred_check
      _
    $region55: #{tpu_custom_call.1} parent=1 // pred_check_branch
      %98 = sbr.rel (0) target = $region57
    $region56: #{tpu_custom_call.1} parent=1 // pred_region
      %99 = dma.done [#allocation10], 2048
    $region57: #{tpu_custom_call.1} parent=1 // pred_fallthru
      _
    %p100 = scmp.eq.s32.totalorder 0, 0
    // Predicated region
    $region58: #{tpu_custom_call.1} parent=1 // pred_check
      %p101 = pneg %p100
    $region59: #{tpu_custom_call.1} parent=1 // pred_check_branch
      %103 = sbr.rel (%p101) target = $region61
    $region60: #{tpu_custom_call.1} parent=1 // pred_region
      %v104 = vld [vmem:[#allocation6] sm:$0xff]
      %105 = vst [vmem:[#allocation2] sm:$0xff] %v104
    $region61: #{tpu_custom_call.1} parent=1 // pred_fallthru
      _
    %v106 = vld [vmem:[#allocation2] sm:$0xff]
    %v107 = vld [vmem:[#allocation3] sm:$0xff]
    %v108 = vld [vmem:[#allocation8] sm:$0xff]
    %v109 = vld [vmem:[#allocation8 + $0x8] sm:$0xff]
    %v110 = vld [vmem:[#allocation8 + $0x10] sm:$0xff]
    %v111 = vld [vmem:[#allocation8 + $0x18] sm:$0xff]
    %v112 = vld [vmem:[#allocation8 + $0x20] sm:$0xff]
    %v113 = vld [vmem:[#allocation8 + $0x28] sm:$0xff]
    %v114 = vld [vmem:[#allocation8 + $0x30] sm:$0xff]
    %v115 = vld [vmem:[#allocation8 + $0x38] sm:$0xff]
    %v116 = vld [vmem:[#allocation8 + $0x40] sm:$0xff]
    %v117 = vld [vmem:[#allocation8 + $0x48] sm:$0xff]
    %v118 = vld [vmem:[#allocation8 + $0x50] sm:$0xff]
    %v119 = vld [vmem:[#allocation8 + $0x58] sm:$0xff]
    %v120 = vld [vmem:[#allocation8 + $0x60] sm:$0xff]
    %v121 = vld [vmem:[#allocation8 + $0x68] sm:$0xff]
    %v122 = vld [vmem:[#allocation8 + $0x70] sm:$0xff]
    %v123 = vld [vmem:[#allocation8 + $0x78] sm:$0xff]
    %v124 = vld [vmem:[#allocation8 + $0x80] sm:$0xff]
    %v125 = vld [vmem:[#allocation8 + $0x88] sm:$0xff]
    %v126 = vld [vmem:[#allocation8 + $0x90] sm:$0xff]
    %v127 = vld [vmem:[#allocation8 + $0x98] sm:$0xff]
    %v128 = vld [vmem:[#allocation8 + $0xa0] sm:$0xff]
    %v129 = vld [vmem:[#allocation8 + $0xa8] sm:$0xff]
    %v130 = vld [vmem:[#allocation8 + $0xb0] sm:$0xff]
    %v131 = vld [vmem:[#allocation8 + $0xb8] sm:$0xff]
    %v132 = vld [vmem:[#allocation8 + $0xc0] sm:$0xff]
    %v133 = vld [vmem:[#allocation8 + $0xc8] sm:$0xff]
    %v134 = vld [vmem:[#allocation8 + $0xd0] sm:$0xff]
    %v135 = vld [vmem:[#allocation8 + $0xd8] sm:$0xff]
    %v136 = vld [vmem:[#allocation8 + $0xe0] sm:$0xff]
    %v137 = vld [vmem:[#allocation8 + $0xe8] sm:$0xff]
    %v138 = vld [vmem:[#allocation8 + $0xf0] sm:$0xff]
    %v139 = vld [vmem:[#allocation8 + $0xf8] sm:$0xff]
    %v140 = vld [vmem:[#allocation8 + $0x100] sm:$0xff]
    %v141 = vld [vmem:[#allocation8 + $0x108] sm:$0xff]
    %v142 = vld [vmem:[#allocation8 + $0x110] sm:$0xff]
    %v143 = vld [vmem:[#allocation8 + $0x118] sm:$0xff]
    %v144 = vld [vmem:[#allocation8 + $0x120] sm:$0xff]
    %v145 = vld [vmem:[#allocation8 + $0x128] sm:$0xff]
    %v146 = vld [vmem:[#allocation8 + $0x130] sm:$0xff]
    %v147 = vld [vmem:[#allocation8 + $0x138] sm:$0xff]
    %v148 = vld [vmem:[#allocation8 + $0x140] sm:$0xff]
    %v149 = vld [vmem:[#allocation8 + $0x148] sm:$0xff]
    %v150 = vld [vmem:[#allocation8 + $0x150] sm:$0xff]
    %v151 = vld [vmem:[#allocation8 + $0x158] sm:$0xff]
    %v152 = vld [vmem:[#allocation8 + $0x160] sm:$0xff]
    %v153 = vld [vmem:[#allocation8 + $0x168] sm:$0xff]
    %v154 = vld [vmem:[#allocation8 + $0x170] sm:$0xff]
    %v155 = vld [vmem:[#allocation8 + $0x178] sm:$0xff]
    %156 = vmatprep.subr.mxu0 %v109
    %157 = vmatpush1.msra.mxu0 %v108
    %158 = vmatprep.subr.mxu0 %v112
    %159 = vmatpush1.msra.mxu0 %v111
    %160 = vmatprep.subr.mxu0 %v115
    %161 = vmatpush1.msra.mxu0 %v114
    %162 = vmatprep.subr.mxu0 %v118
    %163 = vmatpush1.msra.mxu0 %v117
    %164 = vmatprep.subr.mxu0 %v121
    %165 = vmatpush1.msra.mxu0 %v120
    %166 = vmatprep.subr.mxu0 %v124
    %167 = vmatpush1.msra.mxu0 %v123
    %168 = vmatprep.subr.mxu0 %v127
    %169 = vmatpush1.msra.mxu0 %v126
    %170 = vmatprep.subr.mxu0 %v130
    %171 = vmatpush1.msra.mxu0 %v129
    %172 = vmatprep.subr.mxu0 %v133
    %173 = vmatpush1.msra.mxu0 %v132
    %174 = vmatprep.subr.mxu0 %v136
    %175 = vmatpush1.msra.mxu0 %v135
    %176 = vmatprep.subr.mxu0 %v139
    %177 = vmatpush1.msra.mxu0 %v138
    %178 = vmatprep.subr.mxu0 %v142
    %179 = vmatpush1.msra.mxu0 %v141
    %180 = vmatprep.subr.mxu0 %v145
    %181 = vmatpush1.msra.mxu0 %v144
    %182 = vmatprep.subr.mxu0 %v148
    %183 = vmatpush1.msra.mxu0 %v147
    %184 = vmatprep.subr.mxu0 %v151
    %185 = vmatpush1.msra.mxu0 %v150
    %186 = vmatprep.subr.mxu0 %v154
    %187 = vmatpush1.msra.mxu0 %v153
    %188 = vmatprep.subr.mxu0 0.0
    %189 = vmatpush1.msra.mxu0 0.0
    %190 = vmatprep.subr.mxu0 0.0
    %191 = vmatpush1.msra.mxu0 0.0
    %192 = vmatprep.subr.mxu0 0.0
    %193 = vmatpush1.msra.mxu0 0.0
    %194 = vmatprep.subr.mxu0 0.0
    %195 = vmatpush1.msra.mxu0 0.0
    %196 = vmatprep.subr.mxu0 0.0
    %197 = vmatpush1.msra.mxu0 0.0
    %198 = vmatprep.subr.mxu0 0.0
    %199 = vmatpush1.msra.mxu0 0.0
    %200 = vmatprep.subr.mxu0 0.0
    %201 = vmatpush1.msra.mxu0 0.0
    %202 = vmatprep.subr.mxu0 0.0
    %203 = vmatpush1.msra.mxu0 0.0
    %204 = vmatprep.subr.mxu0 0.0
    %205 = vmatpush1.msra.mxu0 0.0
    %206 = vmatprep.subr.mxu0 0.0
    %207 = vmatpush1.msra.mxu0 0.0
    %208 = vmatprep.subr.mxu0 0.0
    %209 = vmatpush1.msra.mxu0 0.0
    %210 = vmatprep.subr.mxu0 0.0
    %211 = vmatpush1.msra.mxu0 0.0
    %212 = vmatprep.subr.mxu0 0.0
    %213 = vmatpush1.msra.mxu0 0.0
    %214 = vmatprep.subr.mxu0 0.0
    %215 = vmatpush1.msra.mxu0 0.0
    %216 = vmatprep.subr.mxu0 0.0
    %217 = vmatpush1.msra.mxu0 0.0
    %218 = vmatprep.subr.mxu0 0.0
    %219 = vmatpush1.msra.mxu0 0.0
    %220 = vmatprep.mubr.f32.mxu0 0.0
    %221 = vmatmul.mubr.f32.gmra.mrb[0].mxu0 %v107
    %v222 = vpop.f32.mrb[0].mxu0
    %v223 = vadd.f32 0.0, %v222
    %v224 = vpop.f32.mrb[0].mxu0
    %v225 = vadd.f32 0.0, %v224
    %226 = vdwg.mxu0
    %227 = vmatprep.subr.mxu0 0.0
    %228 = vmatpush1.msra.mxu0 %v110
    %229 = vmatprep.subr.mxu0 0.0
    %230 = vmatpush1.msra.mxu0 %v113
    %231 = vmatprep.subr.mxu0 0.0
    %232 = vmatpush1.msra.mxu0 %v116
    %233 = vmatprep.subr.mxu0 0.0
    %234 = vmatpush1.msra.mxu0 %v119
    %235 = vmatprep.subr.mxu0 0.0
    %236 = vmatpush1.msra.mxu0 %v122
    %237 = vmatprep.subr.mxu0 0.0
    %238 = vmatpush1.msra.mxu0 %v125
    %239 = vmatprep.subr.mxu0 0.0
    %240 = vmatpush1.msra.mxu0 %v128
    %241 = vmatprep.subr.mxu0 0.0
    %242 = vmatpush1.msra.mxu0 %v131
    %243 = vmatprep.subr.mxu0 0.0
    %244 = vmatpush1.msra.mxu0 %v134
    %245 = vmatprep.subr.mxu0 0.0
    %246 = vmatpush1.msra.mxu0 %v137
    %247 = vmatprep.subr.mxu0 0.0
    %248 = vmatpush1.msra.mxu0 %v140
    %249 = vmatprep.subr.mxu0 0.0
    %250 = vmatpush1.msra.mxu0 %v143
    %251 = vmatprep.subr.mxu0 0.0
    %252 = vmatpush1.msra.mxu0 %v146
    %253 = vmatprep.subr.mxu0 0.0
    %254 = vmatpush1.msra.mxu0 %v149
    %255 = vmatprep.subr.mxu0 0.0
    %256 = vmatpush1.msra.mxu0 %v152
    %257 = vmatprep.subr.mxu0 0.0
    %258 = vmatpush1.msra.mxu0 %v155
    %259 = vmatprep.subr.mxu0 0.0
    %260 = vmatpush1.msra.mxu0 0.0
    %261 = vmatprep.subr.mxu0 0.0
    %262 = vmatpush1.msra.mxu0 0.0
    %263 = vmatprep.subr.mxu0 0.0
    %264 = vmatpush1.msra.mxu0 0.0
    %265 = vmatprep.subr.mxu0 0.0
    %266 = vmatpush1.msra.mxu0 0.0
    %267 = vmatprep.subr.mxu0 0.0
    %268 = vmatpush1.msra.mxu0 0.0
    %269 = vmatprep.subr.mxu0 0.0
    %270 = vmatpush1.msra.mxu0 0.0
    %271 = vmatprep.subr.mxu0 0.0
    %272 = vmatpush1.msra.mxu0 0.0
    %273 = vmatprep.subr.mxu0 0.0
    %274 = vmatpush1.msra.mxu0 0.0
    %275 = vmatprep.subr.mxu0 0.0
    %276 = vmatpush1.msra.mxu0 0.0
    %277 = vmatprep.subr.mxu0 0.0
    %278 = vmatpush1.msra.mxu0 0.0
    %279 = vmatprep.subr.mxu0 0.0
    %280 = vmatpush1.msra.mxu0 0.0
    %281 = vmatprep.subr.mxu0 0.0
    %282 = vmatpush1.msra.mxu0 0.0
    %283 = vmatprep.subr.mxu0 0.0
    %284 = vmatpush1.msra.mxu0 0.0
    %285 = vmatprep.subr.mxu0 0.0
    %286 = vmatpush1.msra.mxu0 0.0
    %287 = vmatprep.subr.mxu0 0.0
    %288 = vmatpush1.msra.mxu0 0.0
    %289 = vmatprep.subr.mxu0 0.0
    %290 = vmatpush1.msra.mxu0 0.0
    %291 = vmatprep.mubr.f32.mxu0 0.0
    %292 = vmatmul.mubr.f32.gmra.mrb[0].mxu0 %v107
    %v293 = vpop.f32.mrb[0].mxu0
    %v294 = vadd.f32 0.0, %v293
    %v295 = vpop.f32.mrb[0].mxu0
    %296 = vdwg.mxu0
    %v297 = vld [vmem:[#allocation9] sm:$0xff]
    %v298 = vld [vmem:[#allocation9 + $0x8] sm:$0xff]
    %v299 = vld [vmem:[#allocation9 + $0x10] sm:$0xff]
    %v300 = vld [vmem:[#allocation9 + $0x18] sm:$0xff]
    %v301 = vld [vmem:[#allocation9 + $0x20] sm:$0xff]
    %v302 = vld [vmem:[#allocation9 + $0x28] sm:$0xff]
    %v303 = vld [vmem:[#allocation9 + $0x30] sm:$0xff]
    %v304 = vld [vmem:[#allocation9 + $0x38] sm:$0xff]
    %v305 = vld [vmem:[#allocation9 + $0x40] sm:$0xff]
    %v306 = vld [vmem:[#allocation9 + $0x48] sm:$0xff]
    %v307 = vld [vmem:[#allocation9 + $0x50] sm:$0xff]
    %v308 = vld [vmem:[#allocation9 + $0x58] sm:$0xff]
    %v309 = vld [vmem:[#allocation9 + $0x60] sm:$0xff]
    %v310 = vld [vmem:[#allocation9 + $0x68] sm:$0xff]
    %v311 = vld [vmem:[#allocation9 + $0x70] sm:$0xff]
    %v312 = vld [vmem:[#allocation9 + $0x78] sm:$0xff]
    %v313 = vld [vmem:[#allocation9 + $0x80] sm:$0xff]
    %v314 = vld [vmem:[#allocation9 + $0x88] sm:$0xff]
    %v315 = vld [vmem:[#allocation9 + $0x90] sm:$0xff]
    %v316 = vld [vmem:[#allocation9 + $0x98] sm:$0xff]
    %v317 = vld [vmem:[#allocation9 + $0xa0] sm:$0xff]
    %v318 = vld [vmem:[#allocation9 + $0xa8] sm:$0xff]
    %v319 = vld [vmem:[#allocation9 + $0xb0] sm:$0xff]
    %v320 = vld [vmem:[#allocation9 + $0xb8] sm:$0xff]
    %v321 = vld [vmem:[#allocation9 + $0xc0] sm:$0xff]
    %v322 = vld [vmem:[#allocation9 + $0xc8] sm:$0xff]
    %v323 = vld [vmem:[#allocation9 + $0xd0] sm:$0xff]
    %v324 = vld [vmem:[#allocation9 + $0xd8] sm:$0xff]
    %v325 = vld [vmem:[#allocation9 + $0xe0] sm:$0xff]
    %v326 = vld [vmem:[#allocation9 + $0xe8] sm:$0xff]
    %v327 = vld [vmem:[#allocation9 + $0xf0] sm:$0xff]
    %v328 = vld [vmem:[#allocation9 + $0xf8] sm:$0xff]
    %v329 = vld [vmem:[#allocation9 + $0x100] sm:$0xff]
    %v330 = vld [vmem:[#allocation9 + $0x108] sm:$0xff]
    %v331 = vld [vmem:[#allocation9 + $0x110] sm:$0xff]
    %v332 = vld [vmem:[#allocation9 + $0x118] sm:$0xff]
    %v333 = vld [vmem:[#allocation9 + $0x120] sm:$0xff]
    %v334 = vld [vmem:[#allocation9 + $0x128] sm:$0xff]
    %v335 = vld [vmem:[#allocation9 + $0x130] sm:$0xff]
    %v336 = vld [vmem:[#allocation9 + $0x138] sm:$0xff]
    %v337 = vld [vmem:[#allocation9 + $0x140] sm:$0xff]
    %v338 = vld [vmem:[#allocation9 + $0x148] sm:$0xff]
    %v339 = vld [vmem:[#allocation9 + $0x150] sm:$0xff]
    %v340 = vld [vmem:[#allocation9 + $0x158] sm:$0xff]
    %v341 = vld [vmem:[#allocation9 + $0x160] sm:$0xff]
    %v342 = vld [vmem:[#allocation9 + $0x168] sm:$0xff]
    %v343 = vld [vmem:[#allocation9 + $0x170] sm:$0xff]
    %v344 = vld [vmem:[#allocation9 + $0x178] sm:$0xff]
    %345 = vmatprep.subr.mxu0 %v298
    %346 = vmatpush1.msra.mxu0 %v297
    %347 = vmatprep.subr.mxu0 %v301
    %348 = vmatpush1.msra.mxu0 %v300
    %349 = vmatprep.subr.mxu0 %v304
    %350 = vmatpush1.msra.mxu0 %v303
    %351 = vmatprep.subr.mxu0 %v307
    %352 = vmatpush1.msra.mxu0 %v306
    %353 = vmatprep.subr.mxu0 %v310
    %354 = vmatpush1.msra.mxu0 %v309
    %355 = vmatprep.subr.mxu0 %v313
    %356 = vmatpush1.msra.mxu0 %v312
    %357 = vmatprep.subr.mxu0 %v316
    %358 = vmatpush1.msra.mxu0 %v315
    %359 = vmatprep.subr.mxu0 %v319
    %360 = vmatpush1.msra.mxu0 %v318
    %361 = vmatprep.subr.mxu0 %v322
    %362 = vmatpush1.msra.mxu0 %v321
    %363 = vmatprep.subr.mxu0 %v325
    %364 = vmatpush1.msra.mxu0 %v324
    %365 = vmatprep.subr.mxu0 %v328
    %366 = vmatpush1.msra.mxu0 %v327
    %367 = vmatprep.subr.mxu0 %v331
    %368 = vmatpush1.msra.mxu0 %v330
    %369 = vmatprep.subr.mxu0 %v334
    %370 = vmatpush1.msra.mxu0 %v333
    %371 = vmatprep.subr.mxu0 %v337
    %372 = vmatpush1.msra.mxu0 %v336
    %373 = vmatprep.subr.mxu0 %v340
    %374 = vmatpush1.msra.mxu0 %v339
    %375 = vmatprep.subr.mxu0 %v343
    %376 = vmatpush1.msra.mxu0 %v342
    %377 = vmatprep.subr.mxu0 0.0
    %378 = vmatpush1.msra.mxu0 0.0
    %379 = vmatprep.subr.mxu0 0.0
    %380 = vmatpush1.msra.mxu0 0.0
    %381 = vmatprep.subr.mxu0 0.0
    %382 = vmatpush1.msra.mxu0 0.0
    %383 = vmatprep.subr.mxu0 0.0
    %384 = vmatpush1.msra.mxu0 0.0
    %385 = vmatprep.subr.mxu0 0.0
    %386 = vmatpush1.msra.mxu0 0.0
    %387 = vmatprep.subr.mxu0 0.0
    %388 = vmatpush1.msra.mxu0 0.0
    %389 = vmatprep.subr.mxu0 0.0
    %390 = vmatpush1.msra.mxu0 0.0
    %391 = vmatprep.subr.mxu0 0.0
    %392 = vmatpush1.msra.mxu0 0.0
    %393 = vmatprep.subr.mxu0 0.0
    %394 = vmatpush1.msra.mxu0 0.0
    %395 = vmatprep.subr.mxu0 0.0
    %396 = vmatpush1.msra.mxu0 0.0
    %397 = vmatprep.subr.mxu0 0.0
    %398 = vmatpush1.msra.mxu0 0.0
    %399 = vmatprep.subr.mxu0 0.0
    %400 = vmatpush1.msra.mxu0 0.0
    %401 = vmatprep.subr.mxu0 0.0
    %402 = vmatpush1.msra.mxu0 0.0
    %403 = vmatprep.subr.mxu0 0.0
    %404 = vmatpush1.msra.mxu0 0.0
    %405 = vmatprep.subr.mxu0 0.0
    %406 = vmatpush1.msra.mxu0 0.0
    %407 = vmatprep.subr.mxu0 0.0
    %408 = vmatpush1.msra.mxu0 0.0
    %409 = vmatprep.mubr.f32.mxu0 0.0
    %410 = vmatmul.mubr.f32.gmra.mrb[0].mxu0 %v106
    %v411 = vpop.f32.mrb[0].mxu0
    %v412 = vadd.f32 0.0, %v411
    %v413 = vpop.f32.mrb[0].mxu0
    %v414 = vadd.f32 0.0, %v413
    %415 = vdwg.mxu0
    %416 = vmatprep.subr.mxu0 0.0
    %417 = vmatpush1.msra.mxu0 %v299
    %418 = vmatprep.subr.mxu0 0.0
    %419 = vmatpush1.msra.mxu0 %v302
    %420 = vmatprep.subr.mxu0 0.0
    %421 = vmatpush1.msra.mxu0 %v305
    %422 = vmatprep.subr.mxu0 0.0
    %423 = vmatpush1.msra.mxu0 %v308
    %424 = vmatprep.subr.mxu0 0.0
    %425 = vmatpush1.msra.mxu0 %v311
    %426 = vmatprep.subr.mxu0 0.0
    %427 = vmatpush1.msra.mxu0 %v314
    %428 = vmatprep.subr.mxu0 0.0
    %429 = vmatpush1.msra.mxu0 %v317
    %430 = vmatprep.subr.mxu0 0.0
    %431 = vmatpush1.msra.mxu0 %v320
    %432 = vmatprep.subr.mxu0 0.0
    %433 = vmatpush1.msra.mxu0 %v323
    %434 = vmatprep.subr.mxu0 0.0
    %435 = vmatpush1.msra.mxu0 %v326
    %436 = vmatprep.subr.mxu0 0.0
    %437 = vmatpush1.msra.mxu0 %v329
    %438 = vmatprep.subr.mxu0 0.0
    %439 = vmatpush1.msra.mxu0 %v332
    %440 = vmatprep.subr.mxu0 0.0
    %441 = vmatpush1.msra.mxu0 %v335
    %442 = vmatprep.subr.mxu0 0.0
    %443 = vmatpush1.msra.mxu0 %v338
    %444 = vmatprep.subr.mxu0 0.0
    %445 = vmatpush1.msra.mxu0 %v341
    %446 = vmatprep.subr.mxu0 0.0
    %447 = vmatpush1.msra.mxu0 %v344
    %448 = vmatprep.subr.mxu0 0.0
    %449 = vmatpush1.msra.mxu0 0.0
    %450 = vmatprep.subr.mxu0 0.0
    %451 = vmatpush1.msra.mxu0 0.0
    %452 = vmatprep.subr.mxu0 0.0
    %453 = vmatpush1.msra.mxu0 0.0
    %454 = vmatprep.subr.mxu0 0.0
    %455 = vmatpush1.msra.mxu0 0.0
    %456 = vmatprep.subr.mxu0 0.0
    %457 = vmatpush1.msra.mxu0 0.0
    %458 = vmatprep.subr.mxu0 0.0
    %459 = vmatpush1.msra.mxu0 0.0
    %460 = vmatprep.subr.mxu0 0.0
    %461 = vmatpush1.msra.mxu0 0.0
    %462 = vmatprep.subr.mxu0 0.0
    %463 = vmatpush1.msra.mxu0 0.0
    %464 = vmatprep.subr.mxu0 0.0
    %465 = vmatpush1.msra.mxu0 0.0
    %466 = vmatprep.subr.mxu0 0.0
    %467 = vmatpush1.msra.mxu0 0.0
    %468 = vmatprep.subr.mxu0 0.0
    %469 = vmatpush1.msra.mxu0 0.0
    %470 = vmatprep.subr.mxu0 0.0
    %471 = vmatpush1.msra.mxu0 0.0
    %472 = vmatprep.subr.mxu0 0.0
    %473 = vmatpush1.msra.mxu0 0.0
    %474 = vmatprep.subr.mxu0 0.0
    %475 = vmatpush1.msra.mxu0 0.0
    %476 = vmatprep.subr.mxu0 0.0
    %477 = vmatpush1.msra.mxu0 0.0
    %478 = vmatprep.subr.mxu0 0.0
    %479 = vmatpush1.msra.mxu0 0.0
    %480 = vmatprep.mubr.f32.mxu0 0.0
    %481 = vmatmul.mubr.f32.gmra.mrb[0].mxu0 %v106
    %v482 = vpop.f32.mrb[0].mxu0
    %v483 = vadd.f32 0.0, %v482
    %v484 = vpop.f32.mrb[0].mxu0
    %485 = vdwg.mxu0
    %v486 = vadd.f32 %v223, %v412
    %v487 = vadd.f32 %v225, %v414
    %v488 = vld [vmem:[%s4] sm:$0x3]
    %v490 = vlaneseq
    %v491 = vshrl.u32 %v490, 7
    %v492 = vsub.s32 0, %v491
    %v493 = vrot.slane %v488, %v492
    %v494 = vlaneseq
    %v495 = vshrl.u32 %v494, 7
    %v496 = vsub.s32 1, %v495
    %v497 = vrot.slane %v488, %v496
    %v500 = vadd.f32 %v486, %v493
    %v501 = vadd.f32 %v487, %v497
    %v502 = vxor.u32 %v500, 2147483648
    %v503 = vxor.u32 %v501, 2147483648
    %v504 = vmul.f32 %v502, 1.442695
    %v505 = vpow.pop %v504
    %v506 = vmul.f32 %v503, 1.442695
    %v507 = vpow.pop %v506
    %v508 = vadd.f32 %v505, 1.0
    %v509 = vadd.f32 %v507, 1.0
    %v510 = vrcp.pop %v508
    %v511 = vmul.f32 1.0, %v510
    %v512 = vrcp.pop %v509
    %v513 = vmul.f32 1.0, %v512
    %v514 = vld [vmem:[%s5] sm:$0x1]
    %v516 = vlaneseq
    %v517 = vshrl.u32 %v516, 7
    %v518 = vsub.s32 0, %v517
    %v519 = vrot.slane %v514, %v518
    %v521 = vadd.f32 %v294, %v519
    %v522 = vld [vmem:[%s6] sm:$0x1]
    %v524 = vlaneseq
    %v525 = vshrl.u32 %v524, 7
    %v526 = vsub.s32 0, %v525
    %v527 = vrot.slane %v522, %v526
    %v529 = vadd.f32 %v483, %v527
    %v530 = vmul.f32 %v511, %v529
    %v531 = vadd.f32 %v521, %v530
    %v532 = vtanh.pop %v531
    %v533 = vsub.f32 1.0, %v513
    %v534 = vmul.f32 %v533, %v532
    %v535 = vmul.f32 %v513, %v106
    %v536 = vadd.f32 %v534, %v535
    %v537 = vld [vmem:[#allocation11] sm:$0xff]
    %v538 = vld [vmem:[#allocation11 + $0x8] sm:$0xff]
    %v539 = vld [vmem:[#allocation11 + $0x10] sm:$0xff]
    %v540 = vld [vmem:[#allocation11 + $0x18] sm:$0xff]
    %v541 = vld [vmem:[#allocation11 + $0x20] sm:$0xff]
    %v542 = vld [vmem:[#allocation11 + $0x28] sm:$0xff]
    %v543 = vld [vmem:[#allocation11 + $0x30] sm:$0xff]
    %v544 = vld [vmem:[#allocation11 + $0x38] sm:$0xff]
    %v545 = vld [vmem:[#allocation11 + $0x40] sm:$0xff]
    %v546 = vld [vmem:[#allocation11 + $0x48] sm:$0xff]
    %v547 = vld [vmem:[#allocation11 + $0x50] sm:$0xff]
    %v548 = vld [vmem:[#allocation11 + $0x58] sm:$0xff]
    %v549 = vld [vmem:[#allocation11 + $0x60] sm:$0xff]
    %v550 = vld [vmem:[#allocation11 + $0x68] sm:$0xff]
    %v551 = vld [vmem:[#allocation11 + $0x70] sm:$0xff]
    %v552 = vld [vmem:[#allocation11 + $0x78] sm:$0xff]
    %v553 = vld [vmem:[%s8] sm:$0x1]
    %v555 = vlaneseq
    %v556 = vshrl.u32 %v555, 7
    %v557 = vsub.s32 0, %v556
    %v558 = vrot.slane %v553, %v557
    %560 = vmatprep.subr.mxu0 0.0
    %561 = vmatpush1.msra.mxu0 %v537
    %562 = vmatprep.subr.mxu0 0.0
    %563 = vmatpush1.msra.mxu0 %v538
    %564 = vmatprep.subr.mxu0 0.0
    %565 = vmatpush1.msra.mxu0 %v539
    %566 = vmatprep.subr.mxu0 0.0
    %567 = vmatpush1.msra.mxu0 %v540
    %568 = vmatprep.subr.mxu0 0.0
    %569 = vmatpush1.msra.mxu0 %v541
    %570 = vmatprep.subr.mxu0 0.0
    %571 = vmatpush1.msra.mxu0 %v542
    %572 = vmatprep.subr.mxu0 0.0
    %573 = vmatpush1.msra.mxu0 %v543
    %574 = vmatprep.subr.mxu0 0.0
    %575 = vmatpush1.msra.mxu0 %v544
    %576 = vmatprep.subr.mxu0 0.0
    %577 = vmatpush1.msra.mxu0 %v545
    %578 = vmatprep.subr.mxu0 0.0
    %579 = vmatpush1.msra.mxu0 %v546
    %580 = vmatprep.subr.mxu0 0.0
    %581 = vmatpush1.msra.mxu0 %v547
    %582 = vmatprep.subr.mxu0 0.0
    %583 = vmatpush1.msra.mxu0 %v548
    %584 = vmatprep.subr.mxu0 0.0
    %585 = vmatpush1.msra.mxu0 %v549
    %586 = vmatprep.subr.mxu0 0.0
    %587 = vmatpush1.msra.mxu0 %v550
    %588 = vmatprep.subr.mxu0 0.0
    %589 = vmatpush1.msra.mxu0 %v551
    %590 = vmatprep.subr.mxu0 0.0
    %591 = vmatpush1.msra.mxu0 %v552
    %592 = vmatprep.subr.mxu0 0.0
    %593 = vmatpush1.msra.mxu0 0.0
    %594 = vmatprep.subr.mxu0 0.0
    %595 = vmatpush1.msra.mxu0 0.0
    %596 = vmatprep.subr.mxu0 0.0
    %597 = vmatpush1.msra.mxu0 0.0
    %598 = vmatprep.subr.mxu0 0.0
    %599 = vmatpush1.msra.mxu0 0.0
    %600 = vmatprep.subr.mxu0 0.0
    %601 = vmatpush1.msra.mxu0 0.0
    %602 = vmatprep.subr.mxu0 0.0
    %603 = vmatpush1.msra.mxu0 0.0
    %604 = vmatprep.subr.mxu0 0.0
    %605 = vmatpush1.msra.mxu0 0.0
    %606 = vmatprep.subr.mxu0 0.0
    %607 = vmatpush1.msra.mxu0 0.0
    %608 = vmatprep.subr.mxu0 0.0
    %609 = vmatpush1.msra.mxu0 0.0
    %610 = vmatprep.subr.mxu0 0.0
    %611 = vmatpush1.msra.mxu0 0.0
    %612 = vmatprep.subr.mxu0 0.0
    %613 = vmatpush1.msra.mxu0 0.0
    %614 = vmatprep.subr.mxu0 0.0
    %615 = vmatpush1.msra.mxu0 0.0
    %616 = vmatprep.subr.mxu0 0.0
    %617 = vmatpush1.msra.mxu0 0.0
    %618 = vmatprep.subr.mxu0 0.0
    %619 = vmatpush1.msra.mxu0 0.0
    %620 = vmatprep.subr.mxu0 0.0
    %621 = vmatpush1.msra.mxu0 0.0
    %622 = vmatprep.subr.mxu0 0.0
    %623 = vmatpush1.msra.mxu0 0.0
    %624 = vmatprep.mubr.f32.mxu0 0.0
    %625 = vmatmul.mubr.f32.gmra.mrb[0].mxu0 %v536
    %v626 = vpop.f32.mrb[0].mxu0
    %v627 = vadd.f32 %v558, %v626
    %v628 = vpop.f32.mrb[0].mxu0
    %629 = vdwg.mxu0
    %630 = vst [vmem:[#allocation2] sm:$0xff] %v536
    %631 = vst [vmem:[#allocation13] sm:$0xff] %v536
    %632 = vst [vmem:[#allocation12] sm:$0xff] %v627
    // Predicated region
    $region62: #{tpu_custom_call.1} parent=1 // pred_check
      _
    $region63: #{tpu_custom_call.1} parent=1 // pred_check_branch
      %634 = sbr.rel (0) target = $region65
    $region64: #{tpu_custom_call.1} parent=1 // pred_region
      %s636 = ssub.s32 128, 128
      %637 = vsyncadd [#allocation5], %s636
      %s639 = sshll.u32 [#allocation12], 4
      %s640 = int_to_ptr.vmem [resolvable:$true] %s639
      %642 = dma.vmem_to_hbm [thread:$0]  %s640, 128, %s9, [#allocation5]
    $region65: #{tpu_custom_call.1} parent=1 // pred_fallthru
      _
    // Predicated region
    $region66: #{tpu_custom_call.1} parent=1 // pred_check
      _
    $region67: #{tpu_custom_call.1} parent=1 // pred_check_branch
      %644 = sbr.rel (0) target = $region69
    $region68: #{tpu_custom_call.1} parent=1 // pred_region
      %s646 = ssub.s32 128, 128
      %647 = vsyncadd [#allocation14], %s646
      %s649 = sshll.u32 [#allocation13], 4
      %s650 = int_to_ptr.vmem [resolvable:$true] %s649
      %652 = dma.vmem_to_hbm [thread:$0]  %s650, 128, %s10, [#allocation14]
    $region69: #{tpu_custom_call.1} parent=1 // pred_fallthru
      _
    // Predicated region
    $region70: #{tpu_custom_call.1} parent=1 // pred_check
      _
    $region71: #{tpu_custom_call.1} parent=1 // pred_check_branch
      %654 = sbr.rel (0) target = $region73
    $region72: #{tpu_custom_call.1} parent=1 // pred_region
      %655 = dma.done [#allocation5], 128
    $region73: #{tpu_custom_call.1} parent=1 // pred_fallthru
      _
    // Predicated region
    $region74: #{tpu_custom_call.1} parent=1 // pred_check
      _
    $region75: #{tpu_custom_call.1} parent=1 // pred_check_branch
      %657 = sbr.rel (0) target = $region77
    $region76: #{tpu_custom_call.1} parent=1 // pred_region
      %658 = dma.done [#allocation14], 128
    $region77: #{tpu_custom_call.1} parent=1 // pred_fallthru
      _
    %659 = vsyncpa [#allocation4], 1
    %660 = vsyncpa [#allocation7], 1
    %661 = vsyncpa [#allocation10], 1
    %662 = vsyncpa [#allocation5], 1
    %663 = vsyncpa [#allocation14], 1

</llo_original>
